<compile_context>
chip_gen: v5e
topology: v5e:2x2
jax: 0.10.0
libtpu: 0.0.40
codegen_flags: <defaults>
</compile_context>

<pallas_src>
import functools

import numpy as np

import jax
import jax.numpy as jnp
from jax import lax
from jax.experimental import pallas as pl
from jax.experimental.pallas import tpu as pltpu


# --------------------------------------------------------------------------
# Per-generation VMEM budget
# --------------------------------------------------------------------------
def _vmem_limit_bytes():
    cap = 64 * 1024 * 1024
    try:
        cap = int(pltpu.get_tpu_info().vmem_capacity_bytes)
    except Exception:
        pass
    # Leave headroom below physical VMEM:
    #   v5e/v6e (128 MiB physical) -> 80 MiB scoped; v7x (64 MiB) -> 40 MiB.
    return int(max(32 * 1024 * 1024, min(cap * 5 // 8, 96 * 1024 * 1024)))


def _round_down(v, m):
    return (v // m) * m


def _choose_lane_tile(C, T, target_bytes, hint):
    """Tile length along T for the (B, C, T) layout (multiple of 128 lanes)."""
    t = int(hint) if hint is not None else target_bytes // (4 * max(C, 1))
    if T < 128:
        return T                               # single full-extent block
    t = max(128, _round_down(t, 128))
    return min(t, _round_down(T, 128))


def _choose_chunk_tile(C, NC, target_bytes, hint):
    """Tile length (in 128-lane chunks) along axis 2 of the (B, C, NC, 128) layout."""
    if hint is not None:
        s = max(1, int(hint) // 128)
    else:
        s = target_bytes // (4 * max(C, 1) * 128)
    if NC <= 8:
        return NC                              # single full-extent block
    s = max(8, _round_down(s, 8))
    return min(s, _round_down(NC, 8))


# --------------------------------------------------------------------------
# Kernels (layout-generic: work for 3-D (1,C,T) and 4-D (1,C,S,128) blocks)
# --------------------------------------------------------------------------
def _fused_kernel(x_ref, g_ref, b_ref, o_ref, *, eps, inv_count):
    """Whole (C, T) batch element resident: stats + normalize + affine in one pass."""
    x = x_ref[...].astype(jnp.float32)
    mean = jnp.sum(x) * inv_count
    xc = x - mean
    var = jnp.sum(xc * xc) * inv_count
    inv = lax.rsqrt(var + eps)
    scale = g_ref[...] * inv                   # (1, C, 1[, 1])  tiny
    shift = b_ref[...] - mean * scale          # (1, C, 1[, 1])  tiny
    o_ref[...] = (x * scale + shift).astype(o_ref.dtype)   # single fused FMA pass


def _stats_kernel(x_ref, sum_ref, m2_ref, *, mask_axis, length, tile, per_step):
    """Pass 1: per-tile partial sum and centred sum-of-squares (Chan merge in JAX).

    The last tile along `mask_axis` may overhang the array; out-of-bounds data
    is garbage, so it is masked before the reductions.
    """
    x = x_ref[...].astype(jnp.float32)
    ragged = (length % tile) != 0
    if ragged:
        t = pl.program_id(1)
        pos = t * tile + lax.broadcasted_iota(jnp.int32, x.shape, mask_axis)
        keep = pos < length
        x = jnp.where(keep, x, 0.0)
        n = (per_step * jnp.minimum(tile, length - t * tile)).astype(jnp.float32)
    else:
        n = jnp.float32(per_step * tile)
    s = jnp.sum(x)
    m = s / n                                  # per-tile mean (centres the sq-sum)
    d = x - m
    if ragged:
        d = jnp.where(keep, d, 0.0)
    m2 = jnp.sum(d * d)
    sum_ref[...] = jnp.broadcast_to(s, sum_ref.shape)
    m2_ref[...] = jnp.broadcast_to(m2, m2_ref.shape)


def _norm_kernel(x_ref, scale_ref, shift_ref, o_ref):
    """Pass 2: fused y = x * scale + shift (scale/shift are (1, C, 1[, 1]))."""
    x = x_ref[...].astype(jnp.float32)
    o_ref[...] = (x * scale_ref[...] + shift_ref[...]).astype(o_ref.dtype)


# --------------------------------------------------------------------------
# pallas_call wrappers
# --------------------------------------------------------------------------
def _fused_call(x_view, g, b, eps, count, vmem_limit):
    B = x_view.shape[0]
    nd = x_view.ndim
    blk = (1,) + x_view.shape[1:]
    tail = (0,) * (nd - 1)
    itemsize = jnp.dtype(x_view.dtype).itemsize
    kernel = functools.partial(_fused_kernel, eps=float(eps),
                               inv_count=1.0 / float(count))
    return pl.pallas_call(
        kernel,
        out_shape=jax.ShapeDtypeStruct(x_view.shape, x_view.dtype),
        grid_spec=pltpu.PrefetchScalarGridSpec(
            num_scalar_prefetch=0,
            grid=(B,),
            in_specs=[
                pl.BlockSpec(blk, lambda bi: (bi,) + tail),
                pl.BlockSpec(g.shape, lambda bi: (0,) * nd),
                pl.BlockSpec(b.shape, lambda bi: (0,) * nd),
            ],
            out_specs=pl.BlockSpec(blk, lambda bi: (bi,) + tail),
        ),
        compiler_params=pltpu.CompilerParams(
            dimension_semantics=("parallel",),
            vmem_limit_bytes=vmem_limit,
        ),
        cost_estimate=pl.CostEstimate(
            flops=7 * B * count,
            transcendentals=B,
            bytes_accessed=2 * B * count * itemsize,
        ),
    )(x_view, g, b)


def _two_pass_call(x_view, g, b, eps, C, T, tile, per_step, vmem_limit):
    B = x_view.shape[0]
    nd = x_view.ndim
    L = x_view.shape[2]                        # tiled axis (T, or T//128 chunks)
    n_t = -(-L // tile)
    itemsize = jnp.dtype(x_view.dtype).itemsize

    blk = (1, C, tile) + x_view.shape[3:]

    def x_map(bi, ti):
        return (bi, 0, ti) + (0,) * (nd - 3)

    # ---- Pass 1: per-tile partial stats, both grid axes parallel (megacore). ----
    stat_shape = jax.ShapeDtypeStruct((B, n_t, 1, 1), jnp.float32)
    stat_blk = (1, 1, 1, 1)

    def stat_map(bi, ti):
        return (bi, ti, 0, 0)

    kernel1 = functools.partial(_stats_kernel, mask_axis=2, length=L,
                                tile=tile, per_step=per_step)
    sums, m2s = pl.pallas_call(
        kernel1,
        out_shape=(stat_shape, stat_shape),
        grid_spec=pltpu.PrefetchScalarGridSpec(
            num_scalar_prefetch=0,
            grid=(B, n_t),
            in_specs=[pl.BlockSpec(blk, x_map)],
            out_specs=[pl.BlockSpec(stat_blk, stat_map),
                       pl.BlockSpec(stat_blk, stat_map)],
        ),
        compiler_params=pltpu.CompilerParams(
            dimension_semantics=("parallel", "parallel"),
            vmem_limit_bytes=vmem_limit,
        ),
        cost_estimate=pl.CostEstimate(
            flops=5 * B * C * T,
            transcendentals=0,
            bytes_accessed=B * C * T * itemsize,
        ),
    )(x_view)

    # ---- Tiny per-batch combine (Chan parallel-variance merge), in JAX. ----
    steps = np.arange(n_t)
    counts = jnp.asarray(per_step * np.minimum(tile, L - steps * tile), jnp.float32)
    s = sums.reshape(B, n_t)
    m2 = m2s.reshape(B, n_t)
    N = jnp.float32(C * T)                     # TRUE element count (no padding)
    mean = jnp.sum(s, axis=1) / N                                        # (B,)
    m_k = s / counts[None, :]                                            # (B, n_t)
    M2 = jnp.sum(m2 + counts[None, :] * jnp.square(m_k - mean[:, None]), axis=1)
    var = jnp.maximum(M2 / N, 0.0)
    inv = lax.rsqrt(var + jnp.float32(eps))                              # (B,)
    g2d = g.reshape(1, C)
    b2d = b.reshape(1, C)
    scale2d = g2d * inv[:, None]                                         # (B, C)
    shift2d = b2d - mean[:, None] * scale2d                              # (B, C)
    pshape = (B, C) + (1,) * (nd - 2)
    scale = scale2d.reshape(pshape)
    shift = shift2d.reshape(pshape)

    # ---- Pass 2: fused y = x * scale + shift; overhanging writes dropped. ----
    p_blk = (1, C) + (1,) * (nd - 2)

    def p_map(bi, ti):
        return (bi,) + (0,) * (nd - 1)

    y = pl.pallas_call(
        _norm_kernel,
        out_shape=jax.ShapeDtypeStruct(x_view.shape, x_view.dtype),
        grid_spec=pltpu.PrefetchScalarGridSpec(
            num_scalar_prefetch=0,
            grid=(B, n_t),
            in_specs=[
                pl.BlockSpec(blk, x_map),
                pl.BlockSpec(p_blk, p_map),
                pl.BlockSpec(p_blk, p_map),
            ],
            out_specs=pl.BlockSpec(blk, x_map),
        ),
        compiler_params=pltpu.CompilerParams(
            dimension_semantics=("parallel", "parallel"),
            vmem_limit_bytes=vmem_limit,
        ),
        cost_estimate=pl.CostEstimate(
            flops=2 * B * C * T,
            transcendentals=0,
            bytes_accessed=2 * B * C * T * itemsize,
        ),
    )(x_view, scale, shift)
    return y


# --------------------------------------------------------------------------
# Public entry point
# --------------------------------------------------------------------------
def layer_norm_1d(x, gamma, beta, eps=1e-6, *, tile_t=None, force_two_pass=False):
    """x: (B, C, T); gamma, beta: (C,). Returns normalized tensor, same shape/dtype."""
    B, C, T = x.shape
    itemsize = jnp.dtype(x.dtype).itemsize
    vmem_limit = _vmem_limit_bytes()

    # Layout: for C < 8 a (., C, tile_t) block wastes (8-C)/8 of every vreg/VMEM
    # tile (sublane padding).  When T is lane-aligned, view x (free reshape) as
    # (B, C, T//128, 128) so the sublane axis packs fully regardless of C.
    pack = (C < 8) and (T % 128 == 0) and (T >= 128)
    if pack:
        NC = T // 128
        x_view = x.reshape(B, C, NC, 128)
        pshape = (1, C, 1, 1)
    else:
        x_view = x
        pshape = (1, C, 1)
    g = gamma.astype(jnp.float32).reshape(pshape)
    b = beta.astype(jnp.float32).reshape(pshape)

    count = C * T

    # Fused single-call path (2 HBM passes: read x once, write y once) whenever
    # one (C, T) batch element fits the per-generation VMEM budget.
    fused_need = count * (4 * itemsize + 8)    # ~2x in + 2x out (dbl-buffered) + f32 temps
    if not pack and C < 8:
        fused_need = fused_need * 8 // max(C, 1)   # sublane-padding waste of (1,C,T) blocks
    if not force_two_pass and fused_need <= vmem_limit:
        y = _fused_call(x_view, g, b, eps, count, vmem_limit)
        return y.reshape(B, C, T) if pack else y

    # Two-pass tiled path (3 HBM passes: read x twice, write y once).
    target = min(4 * 1024 * 1024, max(512 * 1024, vmem_limit // 10))   # f32 bytes / tile
    if not pack and C < 8:
        target = max(256 * 1024, target * C // 8)
    if pack:
        tile = _choose_chunk_tile(C, NC, target, tile_t)
        per_step = C * 128
    else:
        tile = _choose_lane_tile(C, T, target, tile_t)
        per_step = C
    y = _two_pass_call(x_view, g, b, eps, C, T, tile, per_step, vmem_limit)
    return y.reshape(B, C, T) if pack else y


# --------------------------------------------------------------------------
# Reference + tests
# --------------------------------------------------------------------------
def _reference(x, gamma, beta, eps=1e-6):
    xf = x.astype(jnp.float32)
    mean = jnp.mean(xf, axis=(1, 2), keepdims=True)
    xc = xf - mean
    var = jnp.mean(xc * xc, axis=(1, 2), keepdims=True)
    y = xc / jnp.sqrt(var + eps)
    y = gamma[None, :, None] * y + beta[None, :, None]
    return y.astype(x.dtype)


if __name__ == "__main__":
    key = jax.random.PRNGKey(0)
    eps = 1e-6
    k1, k2, k3, k4 = jax.random.split(key, 4)

    # 1) Small shape -> fused single-call path, (B, C, T) layout.
    B, C, T = 2, 4, 16
    x = jax.random.normal(k1, (B, C, T), dtype=jnp.float32)
    gamma = jnp.ones((C,), jnp.float32)        # matches nn.Parameter(torch.ones)
    beta = jnp.zeros((C,), jnp.float32)        # matches nn.Parameter(torch.zeros)
    out = jax.block_until_ready(layer_norm_1d(x, gamma, beta, eps))
    ref = _reference(x, gamma, beta, eps)
    assert out.shape == x.shape and out.dtype == x.dtype
    assert jnp.allclose(out, ref, atol=1e-5, rtol=1e-5)

    # 2) Fused path on the lane-packed (B, C, T//128, 128) layout (C < 8, T % 128 == 0).
    x4 = jax.random.normal(k2, (1, 4, 256), dtype=jnp.float32) + 0.5
    g4 = 1.0 + 0.1 * jax.random.normal(jax.random.PRNGKey(1), (4,), jnp.float32)
    b4 = 0.1 * jax.random.normal(jax.random.PRNGKey(2), (4,), jnp.float32)
    out4 = jax.block_until_ready(layer_norm_1d(x4, g4, b4, eps))
    assert jnp.allclose(out4, _reference(x4, g4, b4, eps), atol=1e-5, rtol=1e-5)

    # 3) Two-pass tiled path, (B, C, T) layout with a ragged (masked) last T tile.
    x3 = 3.0 + jax.random.normal(k3, (2, 8, 200), dtype=jnp.float32)
    g3 = 1.0 + 0.1 * jax.random.normal(jax.random.PRNGKey(3), (8,), jnp.float32)
    b3 = 0.1 * jax.random.normal(jax.random.PRNGKey(4), (8,), jnp.float32)
    out3 = jax.block_until_ready(
        layer_norm_1d(x3, g3, b3, eps, tile_t=128, force_two_pass=True))
    assert out3.shape == x3.shape and out3.dtype == x3.dtype
    assert jnp.allclose(out3, _reference(x3, g3, b3, eps), atol=1e-4, rtol=1e-4)

    # 4) Two-pass tiled path, lane-packed layout with a ragged chunk tile.
    x5 = jax.random.normal(k4, (2, 4, 1280), dtype=jnp.float32)
    g5 = 1.0 + 0.1 * jax.random.normal(jax.random.PRNGKey(5), (4,), jnp.float32)
    b5 = 0.1 * jax.random.normal(jax.random.PRNGKey(6), (4,), jnp.float32)
    out5 = jax.block_until_ready(layer_norm_1d(x5, g5, b5, eps, force_two_pass=True))
    assert out5.shape == x5.shape and out5.dtype == x5.dtype
    assert jnp.allclose(out5, _reference(x5, g5, b5, eps), atol=1e-4, rtol=1e-4)

    print("KERNEL_OK")
</pallas_src>

<mosaic_0001>
module attributes {stable_mosaic.version = 11 : i64} {
  func.func @_fused_kernel(%arg0: i32, %arg1: memref<1x4x16xf32, #tpu.memory_space<vmem>>, %arg2: memref<1x4x1xf32, #tpu.memory_space<vmem>>, %arg3: memref<1x4x1xf32, #tpu.memory_space<vmem>>, %arg4: memref<1x4x16xf32, #tpu.memory_space<vmem>>) attributes {dimension_semantics = [#tpu.dimension_semantics<parallel>], iteration_bounds = array<i64: 2>, scalar_prefetch = 0 : i64, scratch_operands = 0 : i64, tpu.core_type = #tpu.core_type<tc>, window_params = [{transform_indices = @transform_0, window_bounds = array<i64: 1, 4, 16>}, {pipeline_mode = #tpu.pipeline_mode<synchronous>, transform_indices = @transform_1, window_bounds = array<i64: 1, 4, 1>}, {pipeline_mode = #tpu.pipeline_mode<synchronous>, transform_indices = @transform_2, window_bounds = array<i64: 1, 4, 1>}, {transform_indices = @transform_3, window_bounds = array<i64: 1, 4, 16>}]} {
    %c0 = arith.constant 0 : index
    %c0_0 = arith.constant 0 : index
    %c0_1 = arith.constant 0 : index
    %0 = vector.load %arg1[%c0, %c0_0, %c0_1] : memref<1x4x16xf32, #tpu.memory_space<vmem>>, vector<1x4x16xf32>
    %1 = vector.shape_cast %0 : vector<1x4x16xf32> to vector<1x1x4x16xf32>
    %cst = arith.constant dense<0.000000e+00> : vector<1xf32>
    %2 = vector.multi_reduction <add>, %1, %cst [1, 2, 3] : vector<1x1x4x16xf32> to vector<1xf32>
    %3 = vector.shape_cast %2 : vector<1xf32> to vector<1x1x1x1xf32>
    %4 = vector.extract %3[0, 0, 0, 0] : f32 from vector<1x1x1x1xf32>
    %cst_2 = arith.constant 1.562500e-02 : f32
    %5 = arith.mulf %4, %cst_2 : f32
    %6 = vector.broadcast %5 : f32 to vector<1x4x16xf32>
    %7 = arith.subf %0, %6 : vector<1x4x16xf32>
    %8 = arith.mulf %7, %7 : vector<1x4x16xf32>
    %9 = vector.shape_cast %8 : vector<1x4x16xf32> to vector<1x1x4x16xf32>
    %cst_3 = arith.constant dense<0.000000e+00> : vector<1xf32>
    %10 = vector.multi_reduction <add>, %9, %cst_3 [1, 2, 3] : vector<1x1x4x16xf32> to vector<1xf32>
    %11 = vector.shape_cast %10 : vector<1xf32> to vector<1x1x1x1xf32>
    %12 = vector.extract %11[0, 0, 0, 0] : f32 from vector<1x1x1x1xf32>
    %cst_4 = arith.constant 1.562500e-02 : f32
    %13 = arith.mulf %12, %cst_4 : f32
    %cst_5 = arith.constant 9.99999997E-7 : f32
    %14 = arith.addf %13, %cst_5 : f32
    %15 = math.rsqrt %14 : f32
    %c0_6 = arith.constant 0 : index
    %c0_7 = arith.constant 0 : index
    %c0_8 = arith.constant 0 : index
    %16 = vector.load %arg2[%c0_6, %c0_7, %c0_8] : memref<1x4x1xf32, #tpu.memory_space<vmem>>, vector<1x4x1xf32>
    %17 = vector.broadcast %15 : f32 to vector<1x4x1xf32>
    %18 = arith.mulf %16, %17 : vector<1x4x1xf32>
    %c0_9 = arith.constant 0 : index
    %c0_10 = arith.constant 0 : index
    %c0_11 = arith.constant 0 : index
    %19 = vector.load %arg3[%c0_9, %c0_10, %c0_11] : memref<1x4x1xf32, #tpu.memory_space<vmem>>, vector<1x4x1xf32>
    %20 = vector.broadcast %5 : f32 to vector<1x4x1xf32>
    %21 = arith.mulf %20, %18 : vector<1x4x1xf32>
    %22 = arith.subf %19, %21 : vector<1x4x1xf32>
    %23 = vector.broadcast %18 : vector<1x4x1xf32> to vector<1x4x16xf32>
    %24 = arith.mulf %0, %23 : vector<1x4x16xf32>
    %25 = vector.broadcast %22 : vector<1x4x1xf32> to vector<1x4x16xf32>
    %26 = arith.addf %24, %25 : vector<1x4x16xf32>
    %c0_12 = arith.constant 0 : index
    %c0_13 = arith.constant 0 : index
    %c0_14 = arith.constant 0 : index
    %27 = vector.load %arg4[%c0_12, %c0_13, %c0_14] : memref<1x4x16xf32, #tpu.memory_space<vmem>>, vector<1x4x16xf32>
    tpu.vector_store %arg4[%c0_12, %c0_13, %c0_14], %26 {strides = array<i32>} : memref<1x4x16xf32, #tpu.memory_space<vmem>>, vector<1x4x16xf32>,
    return
  }
  func.func @transform_0(%arg0: i32) -> (i32, i32, i32) {
    %c0_i32 = arith.constant 0 : i32
    %c0_i32_0 = arith.constant 0 : i32
    %c0_i32_1 = arith.constant 0 : i32
    return %arg0, %c0_i32, %c0_i32_0 : i32, i32, i32
  }
  func.func @transform_1(%arg0: i32) -> (i32, i32, i32) {
    %c0_i32 = arith.constant 0 : i32
    %c0_i32_0 = arith.constant 0 : i32
    %c0_i32_1 = arith.constant 0 : i32
    %c0_i32_2 = arith.constant 0 : i32
    return %c0_i32, %c0_i32_0, %c0_i32_1 : i32, i32, i32
  }
  func.func @transform_2(%arg0: i32) -> (i32, i32, i32) {
    %c0_i32 = arith.constant 0 : i32
    %c0_i32_0 = arith.constant 0 : i32
    %c0_i32_1 = arith.constant 0 : i32
    %c0_i32_2 = arith.constant 0 : i32
    return %c0_i32, %c0_i32_0, %c0_i32_1 : i32, i32, i32
  }
  func.func @transform_3(%arg0: i32) -> (i32, i32, i32) {
    %c0_i32 = arith.constant 0 : i32
    %c0_i32_0 = arith.constant 0 : i32
    %c0_i32_1 = arith.constant 0 : i32
    return %arg0, %c0_i32, %c0_i32_0 : i32, i32, i32
  }
}

</mosaic_0001>

<llo_original>
// kernel: tpu_custom_call.1
$region0: #{tpu_custom_call.1}
  #allocation0 [shape = 'u32[]', space=smem, size = 0x4, offset = 0x4, fixed_abs, tag = 'smem constant byte address 0x4 - core index']
  #allocation1 [shape = 'u32[72,128]{1,0:T(1,128)}', space=vmem, size = 0x9000, scoped, tag = 'internal scratch']
  %s0 = inlined_call_operand.vmem [shape: f32[2,4,16], index: 0, kind: input, shape index: {}]
  %s1 = inlined_call_operand.vmem [shape: f32[1,4,1], index: 1, kind: input, shape index: {}]
  %s2 = inlined_call_operand.vmem [shape: f32[1,4,1], index: 2, kind: input, shape index: {}]
  %s3 = inlined_call_operand.hbm [shape: f32[2,4,16], index: 3, kind: output, shape index: {}]
  %s4 = sld [smem:[#allocation0]]
  $region45: #{tpu_custom_call.1} parent=0
    _
  %s6 = ssub.s32 1, %s4
  %s7 = scalar_select 0, %s6, %s4
  $region1: #{tpu_custom_call.1} parent=0
    #allocation2 [shape = 'u8[4096]{0}', space=vmem, size = 0x1000, scoped, tag = 'output window, operand 0']
    #allocation3 [shape = 's32[2]{0}', space=sflag, size = 0x8, scoped, tag = 'scoped memory for tpu_custom_call.1']
    %8 = vsyncpa [#allocation3], 0
    %s9 = scalar_lea.sflag [#allocation3], 1
    %10 = vsyncpa %s9, 0
    loop: start=0, step=1, limit=4
    $region2: #{tpu_custom_call.1} parent=1 // loop_pre_header
      _
    $region3: #{tpu_custom_call.1} parent=1 // loop_header
      %s12 = sphi 0, %s16
      %p13 = scmp.ge.s32.totalorder %s12, 4
      %s22 = sphi 0, %s24
      %s25 = sphi 0, %s22
      %s26 = sphi 0, %s25
      %s42 = sphi 0, %s26
      %s46 = sphi 0, %s46
      %s48 = sphi 0, %s46
      %s49 = sphi 0, %s48
      %s63 = sphi 0, %s49
      %s67 = sphi 0, %s67
      %s69 = sphi 0, %s67
      %s70 = sphi 0, %s69
      %s84 = sphi 0, %s70
      %s90 = sphi 0, %s92
      %s93 = sphi 0, %s90
      %s94 = sphi 0, %s93
      %s110 = sphi 0, %s94
    $region4: #{tpu_custom_call.1} parent=1 // loop_header_branch
      %15 = sbr.rel (%p13) target = $region8
    $region5: #{tpu_custom_call.1} parent=1 // loop_body
      %s17 = ssub.s32 %s12, 1
      %s18 = ssub.s32 %s12, 2
      %s19 = sadd.s32 %s12, 1
      %s20 = ssub.s32 %s12, %s19
      %p21 = scmp.eq.s32.totalorder %s20, 0
      %s23 = sadd.s32 %s22, 1
      %s24 = scalar_select %p21, %s22, %s23
      %p27 = pneg %p21
      %p28 = scmp.eq.s32.totalorder %s12, 1
      %p29 = por %p27, %p28
      %p30 = scmp.ne.s32.totalorder %s22, %s25
      %p31 = scmp.eq.s32.totalorder %s12, 0
      %p32 = por %p30, %p31
      %p33 = scmp.ne.s32.totalorder %s22, %s25
      %p34 = scmp.eq.s32.totalorder %s17, 1
      %p35 = por %p33, %p34
      %p36 = scmp.ne.s32.totalorder %s25, %s26
      %p37 = scmp.eq.s32.totalorder %s17, 0
      %p38 = por %p36, %p37
      %p39 = scmp.ne.s32.totalorder %s25, %s26
      %p40 = scmp.eq.s32.totalorder %s18, 1
      %p41 = por %p39, %p40
      %p43 = scmp.ne.s32.totalorder %s26, %s42
      %p44 = scmp.eq.s32.totalorder %s18, 0
      %p45 = por %p43, %p44
      %s47 = sadd.s32 %s46, 1
      %p50 = scmp.eq.s32.totalorder %s12, 1
      %p51 = scmp.ne.s32.totalorder %s46, %s48
      %p52 = scmp.eq.s32.totalorder %s12, 0
      %p53 = por %p51, %p52
      %p54 = scmp.ne.s32.totalorder %s46, %s48
      %p55 = scmp.eq.s32.totalorder %s17, 1
      %p56 = por %p54, %p55
      %p57 = scmp.ne.s32.totalorder %s48, %s49
      %p58 = scmp.eq.s32.totalorder %s17, 0
      %p59 = por %p57, %p58
      %p60 = scmp.ne.s32.totalorder %s48, %s49
      %p61 = scmp.eq.s32.totalorder %s18, 1
      %p62 = por %p60, %p61
      %p64 = scmp.ne.s32.totalorder %s49, %s63
      %p65 = scmp.eq.s32.totalorder %s18, 0
      %p66 = por %p64, %p65
      %s68 = sadd.s32 %s67, 1
      %p71 = scmp.eq.s32.totalorder %s12, 1
      %p72 = scmp.ne.s32.totalorder %s67, %s69
      %p73 = scmp.eq.s32.totalorder %s12, 0
      %p74 = por %p72, %p73
      %p75 = scmp.ne.s32.totalorder %s67, %s69
      %p76 = scmp.eq.s32.totalorder %s17, 1
      %p77 = por %p75, %p76
      %p78 = scmp.ne.s32.totalorder %s69, %s70
      %p79 = scmp.eq.s32.totalorder %s17, 0
      %p80 = por %p78, %p79
      %p81 = scmp.ne.s32.totalorder %s69, %s70
      %p82 = scmp.eq.s32.totalorder %s18, 1
      %p83 = por %p81, %p82
      %p85 = scmp.ne.s32.totalorder %s70, %s84
      %p86 = scmp.eq.s32.totalorder %s18, 0
      %p87 = por %p85, %p86
      %s88 = ssub.s32 %s12, %s19
      %p89 = scmp.eq.s32.totalorder %s88, 0
      %s91 = sadd.s32 %s90, 1
      %s92 = scalar_select %p89, %s90, %s91
      %p95 = pneg %p89
      %p96 = scmp.eq.s32.totalorder %s12, 1
      %p97 = por %p95, %p96
      %p98 = scmp.ne.s32.totalorder %s90, %s93
      %p99 = scmp.eq.s32.totalorder %s12, 0
      %p100 = por %p98, %p99
      %p101 = scmp.ne.s32.totalorder %s90, %s93
      %p102 = scmp.eq.s32.totalorder %s17, 1
      %p103 = por %p101, %p102
      %p104 = scmp.ne.s32.totalorder %s93, %s94
      %p105 = scmp.eq.s32.totalorder %s17, 0
      %p106 = por %p104, %p105
      %p107 = scmp.ne.s32.totalorder %s93, %s94
      %p108 = scmp.eq.s32.totalorder %s18, 1
      %p109 = por %p107, %p108
      %p111 = scmp.ne.s32.totalorder %s94, %s110
      %p112 = scmp.eq.s32.totalorder %s18, 0
      %p113 = por %p111, %p112
      %p114 = scmp.le.s32.totalorder 1, %s12
      %p115 = scmp.lt.s32.totalorder %s12, 3
      %p116 = pnand %p114, %p115
      %p117 = pneg %p116
      // Predicated region
      $region9: #{tpu_custom_call.1} parent=5 // pred_check
        _
      $region10: #{tpu_custom_call.1} parent=5 // pred_check_branch
        %119 = sbr.rel (%p116) target = $region12
      $region11: #{tpu_custom_call.1} parent=5 // pred_region
        %s120 = ssub.s32 %s12, 1
        // Predicated region
        $region13: #{tpu_custom_call.1} parent=11 // pred_check
          %p121 = pneg %p59
        $region14: #{tpu_custom_call.1} parent=11 // pred_check_branch
          %123 = sbr.rel (%p121) target = $region16
        $region15: #{tpu_custom_call.1} parent=11 // pred_region
          _
        $region16: #{tpu_custom_call.1} parent=11 // pred_fallthru
          _
        // Predicated region
        $region17: #{tpu_custom_call.1} parent=11 // pred_check
          %p124 = pneg %p80
        $region18: #{tpu_custom_call.1} parent=11 // pred_check_branch
          %126 = sbr.rel (%p124) target = $region20
        $region19: #{tpu_custom_call.1} parent=11 // pred_region
          _
        $region20: #{tpu_custom_call.1} parent=11 // pred_fallthru
          _
      $region12: #{tpu_custom_call.1} parent=5 // pred_fallthru
        _
      %p127 = scmp.lt.s32.totalorder %s12, 2
      // Predicated region
      $region21: #{tpu_custom_call.1} parent=5 // pred_check
        %p128 = pneg %p127
      $region22: #{tpu_custom_call.1} parent=5 // pred_check_branch
        %130 = sbr.rel (%p128) target = $region24
      $region23: #{tpu_custom_call.1} parent=5 // pred_region
        // Predicated region
        $region25: #{tpu_custom_call.1} parent=23 // pred_check
          %p131 = pneg %p32
        $region26: #{tpu_custom_call.1} parent=23 // pred_check_branch
          %133 = sbr.rel (%p131) target = $region28
        $region27: #{tpu_custom_call.1} parent=23 // pred_region
          %p134 = scmp.lt.s32.totalorder %s12, 1
          %s135 = scalar_select %p134, %s12, 1
          %s136 = smul.addr %s135, 4
          %s137 = scalar_lea.vmem %s0, %s136
        $region28: #{tpu_custom_call.1} parent=23 // pred_fallthru
          _
      $region24: #{tpu_custom_call.1} parent=5 // pred_fallthru
        _
      %p138 = scmp.le.s32.totalorder 1, %s12
      %p139 = scmp.lt.s32.totalorder %s12, 3
      %p140 = pnand %p138, %p139
      %p141 = pneg %p140
      // Predicated region
      $region29: #{tpu_custom_call.1} parent=5 // pred_check
        _
      $region30: #{tpu_custom_call.1} parent=5 // pred_check_branch
        %143 = sbr.rel (%p140) target = $region32
      $region31: #{tpu_custom_call.1} parent=5 // pred_region
        %s144 = ssub.s32 %s12, 1
        %p145 = scmp.lt.s32.totalorder %s17, 1
        %s146 = scalar_select %p145, %s17, 1
        %s147 = smul.addr %s146, 4
        %s148 = scalar_lea.vmem %s0, %s147
        %p149 = pneg %p38
        %p150 = pneg %p35
        %p151 = pneg %p59
        %p152 = pneg %p56
        %p153 = pneg %p80
        %p154 = pneg %p77
        %p155 = pneg %p106
        %p156 = pneg %p103
        %s157 = sand.u32 %s93, 1
        %s158 = scalar_lea.sflag [#allocation3], %s157
        %s159 = sand.u32 %s93, 1
        %s160 = smul.addr %s159, 4
        %s161 = scalar_lea.vmem [#allocation2], %s160
        %p162 = scmp.lt.s32.totalorder %s17, 1
        %s163 = scalar_select %p162, %s17, 1
        %s164 = smul.addr %s163, 4
        %s165 = scalar_lea.vmem %s0, %s164
        %v166 = vld [vmem:[%s165] sm:$0xf]
        %vm167 = vcmask 125952
        %v168 = vsel %vm167, %v166, 0.0
        %169 = vadd.xlane.f32.xlu0 %v168
        %v170 = vpop.xlane.xlu0 %169
        %v171 = vrot.slane %v170, 4
        %v172 = vadd.f32 %v170, %v171
        %v173 = vrot.slane %v172, 2
        %v174 = vadd.f32 %v172, %v173
        %v175 = vrot.slane %v174, 1
        %v176 = vadd.f32 %v174, %v175
        %s177 = vtos %v176
        %s178 = smul.f32 %s177, 0.015625
        %v179 = vstv %s178
        %v180 = vsub.f32 %v166, %v179
        %v181 = vmul.f32 %v180, %v180
        %v182 = vsel %vm167, %v181, 0.0
        %183 = vadd.xlane.f32.xlu0 %v182
        %v184 = vpop.xlane.xlu0 %183
        %v185 = vrot.slane %v184, 4
        %v186 = vadd.f32 %v184, %v185
        %v187 = vrot.slane %v186, 2
        %v188 = vadd.f32 %v186, %v187
        %v189 = vrot.slane %v188, 1
        %v190 = vadd.f32 %v188, %v189
        %s191 = vtos %v190
        %s192 = smul.f32 %s191, 0.015625
        %s193 = sadd.f32 %s192, 1e-06
        %v194 = vstv %s193
        %v195 = vrsqrt.pop %v194
        %v196 = vmul.f32 %v195, %v194
        %v197 = vmul.f32 %v196, %v195
        %v198 = vmul.f32 0.5, %v197
        %v199 = vsub.f32 1.5, %v198
        %v200 = vmul.f32 %v195, %v199
        %vm201 = vweird.f32 %v194
        %vm202 = vweird.f32 %v195
        %vm203 = vmor %vm201, %vm202
        %v204 = vsel %vm203, %v195, %v200
        %s205 = vtos %v204
        %v206 = vld [vmem:[%s1] sm:$0xf]
        %v207 = vstv %s205
        %v208 = vmul.f32 %v206, %v207
        %v209 = vld [vmem:[%s2] sm:$0xf]
        %v210 = vmul.f32 %v179, %v208
        %v211 = vsub.f32 %v209, %v210
        %213 = vset.pattern.permute.xlu0 0
        %214 = vperm.xlu0 %213, %v208
        %v215 = vpop.permute.xlu0 %214
        %v217 = vmul.f32 %v166, %v215
        %219 = vset.pattern.permute.xlu0 0
        %220 = vperm.xlu0 %219, %v211
        %v221 = vpop.permute.xlu0 %220
        %v223 = vadd.f32 %v217, %v221
        %224 = vst.msk [vmem:[%s161] sm:$0xf] %vm167, %v223
        %s225 = sand.u32 %s93, 1
        %s226 = scalar_lea.sflag [#allocation3], %s225
        %s227 = sand.u32 %s93, 1
        %s228 = smul.addr %s227, 4
        %s229 = scalar_lea.vmem [#allocation2], %s228
        // Predicated region
        $region33: #{tpu_custom_call.1} parent=31 // pred_check
          %p230 = pneg %p103
        $region34: #{tpu_custom_call.1} parent=31 // pred_check_branch
          %232 = sbr.rel (%p230) target = $region36
        $region35: #{tpu_custom_call.1} parent=31 // pred_region
          %234 = vsyncadd %s226, 0
          %s235 = smul.addr %s17, 4
          %s236 = scalar_lea.hbm %s3, %s235
          %s238 = sshll.u32 %s229, 4
          %s239 = int_to_ptr.vmem [resolvable:$true] %s238
          %s240 = sshll.u32 %s236, 4
          %s241 = int_to_ptr.hbm [resolvable:$true] %s240
          %243 = dma.vmem_to_hbm [thread:$0]  %s239, 64, %s241, %s226
        $region36: #{tpu_custom_call.1} parent=31 // pred_fallthru
          _
      $region32: #{tpu_custom_call.1} parent=5 // pred_fallthru
        _
      %p244 = scmp.le.s32.totalorder 2, %s12
      // Predicated region
      $region37: #{tpu_custom_call.1} parent=5 // pred_check
        %p245 = pneg %p244
      $region38: #{tpu_custom_call.1} parent=5 // pred_check_branch
        %247 = sbr.rel (%p245) target = $region40
      $region39: #{tpu_custom_call.1} parent=5 // pred_region
        %s248 = ssub.s32 %s12, 2
        // Predicated region
        $region41: #{tpu_custom_call.1} parent=39 // pred_check
          %p249 = pneg %p109
        $region42: #{tpu_custom_call.1} parent=39 // pred_check_branch
          %251 = sbr.rel (%p249) target = $region44
        $region43: #{tpu_custom_call.1} parent=39 // pred_region
          %s252 = sand.u32 %s94, 1
          %s253 = scalar_lea.sflag [#allocation3], %s252
          %s254 = sand.u32 %s94, 1
          %s255 = smul.addr %s254, 4
          %s256 = scalar_lea.vmem [#allocation2], %s255
          %258 = dma.done %s253, 64
        $region44: #{tpu_custom_call.1} parent=39 // pred_fallthru
          _
      $region40: #{tpu_custom_call.1} parent=5 // pred_fallthru
        _
    $region6: #{tpu_custom_call.1} parent=1 // loop_footer
      %s16 = sadd.s32 1, %s12
    $region7: #{tpu_custom_call.1} parent=1 // loop_footer_branch
      %11 = sbr.rel target = $region3
    $region8: #{tpu_custom_call.1} parent=1 // loop_exit
      _
    %259 = vsyncpa [#allocation3], 1
    %s260 = scalar_lea.sflag [#allocation3], 1
    %261 = vsyncpa %s260, 1

</llo_original>
